<compile_context>
chip_gen: v5e
topology: v5e:2x2
jax: 0.10.0
libtpu: 0.0.40
codegen_flags: <defaults>
</compile_context>

<pallas_src>
import jax
import jax.numpy as jnp
from jax.experimental import pallas as pl
from jax.experimental.pallas import tpu as pltpu

EPS = 1e-8


def _cln_kernel(x_ref, gain_ref, bias_ref, o_ref, tri_ref, carry_ref):
    # x_ref:     (BB, C, TT) input tile (f32 or bf16; stats in f32)
    # gain_ref:  (C, 1) f32 resident; bias_ref: (C, 1) f32 resident
    # o_ref:     (BB, C, TT) output tile (same dtype as x)
    # tri_ref:   (TT, TT) f32 VMEM scratch, tri[s, t] = 1 iff s <= t
    # carry_ref: (2*BB, 1) f32 VMEM scratch: running [sums; sums-of-squares]
    #
    # Invariant: time is the LAST ("arbitrary", serially iterated) grid axis;
    # the carry reset/update below relies on time tiles running in order
    # within each batch-block row.
    t_tile = pl.program_id(1)
    BB, C, TT = x_ref.shape

    @pl.when(t_tile == 0)
    def _init():
        # (Re)build the triangular prefix-sum matrix and zero the carry at the
        # start of every batch-block row.  Rebuilding per row (not just the
        # very first program) stays correct when the "parallel" batch axis is
        # sharded across TensorCores (each core has its own scratch); cost is
        # negligible.
        row = jax.lax.broadcasted_iota(jnp.int32, (TT, TT), 0)
        col = jax.lax.broadcasted_iota(jnp.int32, (TT, TT), 1)
        tri_ref[...] = jnp.where(row <= col, 1.0, 0.0).astype(jnp.float32)
        carry_ref[...] = jnp.zeros_like(carry_ref)

    x = x_ref[...].astype(jnp.float32)                      # (BB, C, TT)

    # Per-time-step channel reductions, stacked so a SINGLE MXU matmul gives
    # both in-tile inclusive prefix sums.
    step_sum = jnp.sum(x, axis=1)                           # (BB, TT)
    step_pow = jnp.sum(x * x, axis=1)                       # (BB, TT)
    stats = jnp.concatenate([step_sum, step_pow], axis=0)   # (2*BB, TT)
    psum = jnp.dot(stats, tri_ref[...],
                   preferred_element_type=jnp.float32)      # (2*BB, TT)

    cum = psum + carry_ref[...]                             # add running totals
    # Tile totals are the last prefix column: single whole-ref carry store.
    carry_ref[...] = cum[:, TT - 1:TT]

    cum_sum = cum[:BB, :]                                   # (BB, TT)
    cum_pow = cum[BB:, :]                                   # (BB, TT)

    # entry count = C * (global_t + 1), in f32; approx reciprocal + one Newton
    # step on the (1, TT) row only.
    pos = jax.lax.broadcasted_iota(jnp.int32, (1, TT), 1).astype(jnp.float32)
    cnt = (pos + (t_tile * TT + 1).astype(jnp.float32)) * jnp.float32(C)
    inv_cnt = pl.reciprocal(cnt, approx=True)
    inv_cnt = inv_cnt * (2.0 - cnt * inv_cnt)               # ~f32-exact 1/cnt

    cum_mean = cum_sum * inv_cnt                             # (BB, TT)
    cum_var = (cum_pow - 2.0 * cum_mean * cum_sum) * inv_cnt + cum_mean * cum_mean
    cum_var = jnp.maximum(cum_var, 0.0)   # guard f32 cancellation (see header)
    inv_std = jax.lax.rsqrt(cum_var + jnp.float32(EPS))      # (BB, TT), EUP

    # Normalize + per-channel affine: 4 VPU ops / element, gain/bias (C, 1)
    # broadcast over (BB, C, TT).
    y = (x - cum_mean[:, None, :]) * inv_std[:, None, :]
    o_ref[...] = (y * gain_ref[...] + bias_ref[...]).astype(o_ref.dtype)


def _round_up(v, m):
    return ((v + m - 1) // m) * m


def cumulate_ln(x, gamma, beta, *, block_t=512, target_tile_bytes=2 << 20,
                max_tile_bytes=4 << 20, prefer_megacore=True):
    """Cumulative layer norm (MLayerNorm forward).

    x: (B, C, T) float array (f32 or bf16; statistics accumulate in f32).
    gamma, beta: per-channel parameters, shape (C,) or (C, 1).
    """
    B, C, T = x.shape
    itemsize = jnp.dtype(x.dtype).itemsize

    gamma = jnp.asarray(gamma, jnp.float32).reshape(C, 1)
    beta = jnp.asarray(beta, jnp.float32).reshape(C, 1)

    # Time tile: lane-dense multiple of 128, no bigger than the padded T,
    # shrunk if a single batch row would blow the per-tile VMEM budget.
    TT = max(128, min(int(block_t) // 128, _round_up(T, 128) // 128) * 128)
    while TT > 128 and C * TT * itemsize > max_tile_bytes:
        TT -= 128
    n_t = pl.cdiv(T, TT)
    T_pad = n_t * TT
    if T_pad != T:
        # Zero-pad time; pad columns come after every real position, so they
        # never influence the cumulative statistics of real positions.
        x = jnp.pad(x, ((0, 0), (0, 0), (0, T_pad - T)))

    # Batch-blocking: for small C even TT=512 gives tiny DMAs, so pack several
    # batch rows per grid step without breaking the serial time carry (the
    # carry stays per batch row).  Keep >= 2 batch blocks when possible so
    # both v7x TensorCores get work on the "parallel" axis.
    bytes_per_row = C * TT * itemsize
    max_bb = max(1, int(target_tile_bytes) // bytes_per_row)
    if prefer_megacore and B >= 2:
        max_bb = min(max_bb, max(1, B // 2))
    BB = 1
    for bb in range(1, min(B, max_bb) + 1):
        if B % bb == 0:
            BB = bb

    out = pl.pallas_call(
        _cln_kernel,
        out_shape=jax.ShapeDtypeStruct((B, C, T_pad), x.dtype),
        grid_spec=pltpu.PrefetchScalarGridSpec(
            num_scalar_prefetch=0,
            # Time axis LAST and "arbitrary": required for the serial carry.
            grid=(B // BB, n_t),
            in_specs=[
                pl.BlockSpec((BB, C, TT), lambda b, t: (b, 0, t)),
                pl.BlockSpec((C, 1), lambda b, t: (0, 0)),    # gamma: resident
                pl.BlockSpec((C, 1), lambda b, t: (0, 0)),    # beta:  resident
            ],
            out_specs=pl.BlockSpec((BB, C, TT), lambda b, t: (b, 0, t)),
            scratch_shapes=[
                pltpu.VMEM((TT, TT), jnp.float32),        # in-kernel tri matrix
                pltpu.VMEM((2 * BB, 1), jnp.float32),     # running-sum carry
            ],
        ),
        compiler_params=pltpu.CompilerParams(
            dimension_semantics=("parallel", "arbitrary"),
            # 4 x tile (in/out double buffers, <= 4 MiB each) + tri (<= 1 MiB)
            # stays well under 32 MiB => fits v5e/v6e and v7x's smaller VMEM.
            vmem_limit_bytes=32 * 1024 * 1024,
        ),
    )(x, gamma, beta)

    return out[:, :, :T] if T_pad != T else out


def cumulate_ln_ref(x, gamma, beta, eps=EPS):
    """Pure-JAX reference mirroring the PyTorch cumulative-LN forward."""
    B, C, T = x.shape
    x = x.astype(jnp.float32)
    gamma = jnp.asarray(gamma, jnp.float32).reshape(1, C, 1)
    beta = jnp.asarray(beta, jnp.float32).reshape(1, C, 1)
    step_sum = x.sum(axis=1)
    step_pow_sum = (x ** 2).sum(axis=1)
    cum_sum = jnp.cumsum(step_sum, axis=1)
    cum_pow_sum = jnp.cumsum(step_pow_sum, axis=1)
    entry_cnt = jnp.arange(C, C * (T + 1), C, dtype=jnp.float32)[None, :]
    cum_mean = cum_sum / entry_cnt
    cum_var = (cum_pow_sum - 2 * cum_mean * cum_sum) / entry_cnt + cum_mean ** 2
    cum_std = jnp.sqrt(cum_var + eps)
    y = (x - cum_mean[:, None, :]) / cum_std[:, None, :]
    return y * gamma + beta


if __name__ == "__main__":
    key = jax.random.PRNGKey(0)
    kx, kg, kb, kx2, kx3, kx4, kg2, kb2 = jax.random.split(key, 8)

    # 1) Small shapes consistent with the module: batch=2, channels=4, T=16.
    #    gamma = beta = ones, matching MLayerNorm's init.
    B, C, T = 2, 4, 16
    x = jax.random.normal(kx, (B, C, T), dtype=jnp.float32)
    gamma = jnp.ones((C,), dtype=jnp.float32)
    beta = jnp.ones((C,), dtype=jnp.float32)
    out = jax.block_until_ready(cumulate_ln(x, gamma, beta))
    ref = cumulate_ln_ref(x, gamma, beta)
    assert out.shape == (B, C, T)
    assert jnp.allclose(out, ref, atol=1e-4, rtol=1e-4), "mismatch (small)"

    # 2) Multi-time-tile: block_t=128 forces 3 time tiles for T=300, which
    #    exercises the cross-tile carry and the time-padding path.
    B2, C2, T2 = 2, 8, 300
    x2 = jax.random.normal(kx2, (B2, C2, T2), dtype=jnp.float32)
    g2 = jax.random.normal(kg, (C2,), dtype=jnp.float32)
    b2 = jax.random.normal(kb, (C2,), dtype=jnp.float32)
    out2 = jax.block_until_ready(cumulate_ln(x2, g2, b2, block_t=128))
    ref2 = cumulate_ln_ref(x2, g2, b2)
    assert out2.shape == (B2, C2, T2)
    assert jnp.allclose(out2, ref2, atol=1e-4, rtol=1e-4), "mismatch (tiled)"

    # 3) Batch-blocked path (small C => BB > 1): B=4, C=8, T=256 picks BB=2.
    B3, C3, T3 = 4, 8, 256
    x3 = jax.random.normal(kx3, (B3, C3, T3), dtype=jnp.float32)
    g3 = jax.random.normal(kg2, (C3,), dtype=jnp.float32)
    b3 = jax.random.normal(kb2, (C3,), dtype=jnp.float32)
    out3 = jax.block_until_ready(cumulate_ln(x3, g3, b3))
    ref3 = cumulate_ln_ref(x3, g3, b3)
    assert jnp.allclose(out3, ref3, atol=1e-4, rtol=1e-4), "mismatch (batch-blocked)"

    # 4) bf16 I/O variant: f32 statistics inside the kernel, bf16 store.
    B4, C4, T4 = 2, 16, 200
    x4 = jax.random.normal(kx4, (B4, C4, T4), dtype=jnp.float32).astype(jnp.bfloat16)
    g4 = jnp.ones((C4,), dtype=jnp.float32)
    b4 = jnp.ones((C4,), dtype=jnp.float32)
    out4 = jax.block_until_ready(cumulate_ln(x4, g4, b4, block_t=128))
    ref4 = cumulate_ln_ref(x4.astype(jnp.float32), g4, b4)
    assert out4.dtype == jnp.bfloat16
    assert jnp.allclose(out4.astype(jnp.float32), ref4, atol=2e-2, rtol=2e-2), \
        "mismatch (bf16)"

    print("KERNEL_OK")
</pallas_src>

<mosaic_0001>
module attributes {stable_mosaic.version = 11 : i64} {
  func.func @_cln_kernel(%arg0: i32, %arg1: i32, %arg2: memref<1x4x128xf32, #tpu.memory_space<vmem>>, %arg3: memref<4x1xf32, #tpu.memory_space<vmem>>, %arg4: memref<4x1xf32, #tpu.memory_space<vmem>>, %arg5: memref<1x4x128xf32, #tpu.memory_space<vmem>>, %arg6: memref<128x128xf32, #tpu.memory_space<vmem>>, %arg7: memref<2x1xf32, #tpu.memory_space<vmem>>) attributes {dimension_semantics = [#tpu.dimension_semantics<parallel>, #tpu.dimension_semantics<arbitrary>], iteration_bounds = array<i64: 2, 1>, scalar_prefetch = 0 : i64, scratch_operands = 2 : i64, tpu.core_type = #tpu.core_type<tc>, window_params = [{transform_indices = @transform_0, window_bounds = array<i64: 1, 4, 128>}, {pipeline_mode = #tpu.pipeline_mode<synchronous>, transform_indices = @transform_1, window_bounds = array<i64: 4, 1>}, {pipeline_mode = #tpu.pipeline_mode<synchronous>, transform_indices = @transform_2, window_bounds = array<i64: 4, 1>}, {transform_indices = @transform_3, window_bounds = array<i64: 1, 4, 128>}]} {
    %c0_i32 = arith.constant 0 : i32
    %0 = arith.cmpi eq, %arg1, %c0_i32 : i32
    %1 = arith.extui %0 : i1 to i32
    %c0_i32_0 = arith.constant 0 : i32
    %2 = arith.cmpi ne, %1, %c0_i32_0 : i32
    scf.if %2 {
      %59 = tpu.iota {dimensions = array<i32: 0>} : vector<128x128xi32>
      %60 = tpu.iota {dimensions = array<i32: 1>} : vector<128x128xi32>
      %61 = arith.cmpi sle, %59, %60 : vector<128x128xi32>
      %cst_23 = arith.constant 1.000000e+00 : f32
      %cst_24 = arith.constant 0.000000e+00 : f32
      %62 = vector.broadcast %cst_23 : f32 to vector<128x128xf32>
      %63 = vector.broadcast %cst_24 : f32 to vector<128x128xf32>
      %64 = arith.select %61, %62, %63 : vector<128x128xi1>, vector<128x128xf32>
      %c0_25 = arith.constant 0 : index
      %c0_26 = arith.constant 0 : index
      %65 = vector.load %arg6[%c0_25, %c0_26] : memref<128x128xf32, #tpu.memory_space<vmem>>, vector<128x128xf32>
      tpu.vector_store %arg6[%c0_25, %c0_26], %64 {strides = array<i32>} : memref<128x128xf32, #tpu.memory_space<vmem>>, vector<128x128xf32>,
      %cst_27 = arith.constant 0.000000e+00 : f32
      %66 = vector.broadcast %cst_27 : f32 to vector<2x1xf32>
      %c0_28 = arith.constant 0 : index
      %c0_29 = arith.constant 0 : index
      %67 = vector.load %arg7[%c0_28, %c0_29] : memref<2x1xf32, #tpu.memory_space<vmem>>, vector<2x1xf32>
      tpu.vector_store %arg7[%c0_28, %c0_29], %66 {strides = array<i32>} : memref<2x1xf32, #tpu.memory_space<vmem>>, vector<2x1xf32>,
    } else {
    }
    %c0 = arith.constant 0 : index
    %c0_1 = arith.constant 0 : index
    %c0_2 = arith.constant 0 : index
    %3 = vector.load %arg2[%c0, %c0_1, %c0_2] : memref<1x4x128xf32, #tpu.memory_space<vmem>>, vector<1x4x128xf32>
    %cst = arith.constant dense<0.000000e+00> : vector<1x128xf32>
    %4 = vector.multi_reduction <add>, %3, %cst [1] : vector<1x4x128xf32> to vector<1x128xf32>
    %5 = arith.mulf %3, %3 : vector<1x4x128xf32>
    %cst_3 = arith.constant dense<0.000000e+00> : vector<1x128xf32>
    %6 = vector.multi_reduction <add>, %5, %cst_3 [1] : vector<1x4x128xf32> to vector<1x128xf32>
    %7 = tpu.concatenate %4, %6 in 0 : vector<1x128xf32>, vector<1x128xf32> -> vector<2x128xf32>
    %c0_4 = arith.constant 0 : index
    %c0_5 = arith.constant 0 : index
    %8 = vector.load %arg6[%c0_4, %c0_5] : memref<128x128xf32, #tpu.memory_space<vmem>>, vector<128x128xf32>
    %cst_6 = arith.constant dense<0.000000e+00> : vector<2x128xf32>
    %9 = tpu.matmul %7, %8, %cst_6 {dimension_numbers = #tpu.dot_dimension_numbers<[1], [0], [0], [1], [0, 0, 1, 1], [], []>} : vector<2x128xf32>, vector<128x128xf32>, vector<2x128xf32> -> vector<2x128xf32>
    %c0_7 = arith.constant 0 : index
    %c0_8 = arith.constant 0 : index
    %10 = vector.load %arg7[%c0_7, %c0_8] : memref<2x1xf32, #tpu.memory_space<vmem>>, vector<2x1xf32>
    %11 = vector.broadcast %10 : vector<2x1xf32> to vector<2x128xf32>
    %12 = arith.addf %9, %11 : vector<2x128xf32>
    %13 = vector.extract_strided_slice %12 {offsets = [0, 127], sizes = [2, 1], strides = [1, 1]} : vector<2x128xf32> to vector<2x1xf32>
    %c0_9 = arith.constant 0 : index
    %c0_10 = arith.constant 0 : index
    %14 = vector.load %arg7[%c0_9, %c0_10] : memref<2x1xf32, #tpu.memory_space<vmem>>, vector<2x1xf32>
    tpu.vector_store %arg7[%c0_9, %c0_10], %13 {strides = array<i32>} : memref<2x1xf32, #tpu.memory_space<vmem>>, vector<2x1xf32>,
    %15 = vector.extract_strided_slice %12 {offsets = [0, 0], sizes = [1, 128], strides = [1, 1]} : vector<2x128xf32> to vector<1x128xf32>
    %16 = vector.extract_strided_slice %12 {offsets = [1, 0], sizes = [1, 128], strides = [1, 1]} : vector<2x128xf32> to vector<1x128xf32>
    %17 = tpu.iota {dimensions = array<i32: 1>} : vector<1x128xi32>
    %18 = arith.sitofp %17 : vector<1x128xi32> to vector<1x128xf32>
    %c128_i32 = arith.constant 128 : i32
    %19 = arith.muli %arg1, %c128_i32 : i32
    %c1_i32 = arith.constant 1 : i32
    %20 = arith.addi %19, %c1_i32 : i32
    %21 = arith.sitofp %20 : i32 to f32
    %22 = vector.broadcast %21 : f32 to vector<1x128xf32>
    %23 = arith.addf %18, %22 : vector<1x128xf32>
    %cst_11 = arith.constant 4.000000e+00 : f32
    %24 = vector.broadcast %cst_11 : f32 to vector<1x128xf32>
    %25 = arith.mulf %23, %24 : vector<1x128xf32>
    %26 = tpu.reciprocal %25 {approx = true} : vector<1x128xf32> -> vector<1x128xf32>
    %27 = arith.mulf %25, %26 : vector<1x128xf32>
    %cst_12 = arith.constant 2.000000e+00 : f32
    %28 = vector.broadcast %cst_12 : f32 to vector<1x128xf32>
    %29 = arith.subf %28, %27 : vector<1x128xf32>
    %30 = arith.mulf %26, %29 : vector<1x128xf32>
    %31 = arith.mulf %15, %30 : vector<1x128xf32>
    %cst_13 = arith.constant 2.000000e+00 : f32
    %32 = vector.broadcast %cst_13 : f32 to vector<1x128xf32>
    %33 = arith.mulf %32, %31 : vector<1x128xf32>
    %34 = arith.mulf %33, %15 : vector<1x128xf32>
    %35 = arith.subf %16, %34 : vector<1x128xf32>
    %36 = arith.mulf %35, %30 : vector<1x128xf32>
    %37 = arith.mulf %31, %31 : vector<1x128xf32>
    %38 = arith.addf %36, %37 : vector<1x128xf32>
    %cst_14 = arith.constant 0.000000e+00 : f32
    %39 = vector.broadcast %cst_14 : f32 to vector<1x128xf32>
    %40 = arith.maximumf %38, %39 : vector<1x128xf32>
    %cst_15 = arith.constant 9.99999993E-9 : f32
    %41 = vector.broadcast %cst_15 : f32 to vector<1x128xf32>
    %42 = arith.addf %40, %41 : vector<1x128xf32>
    %43 = math.rsqrt %42 : vector<1x128xf32>
    %44 = vector.shape_cast %31 : vector<1x128xf32> to vector<1x1x128xf32>
    %45 = vector.broadcast %44 : vector<1x1x128xf32> to vector<1x4x128xf32>
    %46 = arith.subf %3, %45 : vector<1x4x128xf32>
    %47 = vector.shape_cast %43 : vector<1x128xf32> to vector<1x1x128xf32>
    %48 = vector.broadcast %47 : vector<1x1x128xf32> to vector<1x4x128xf32>
    %49 = arith.mulf %46, %48 : vector<1x4x128xf32>
    %c0_16 = arith.constant 0 : index
    %c0_17 = arith.constant 0 : index
    %50 = vector.load %arg3[%c0_16, %c0_17] : memref<4x1xf32, #tpu.memory_space<vmem>>, vector<4x1xf32>
    %51 = vector.shape_cast %50 : vector<4x1xf32> to vector<1x4x1xf32>
    %52 = vector.broadcast %51 : vector<1x4x1xf32> to vector<1x4x128xf32>
    %53 = arith.mulf %49, %52 : vector<1x4x128xf32>
    %c0_18 = arith.constant 0 : index
    %c0_19 = arith.constant 0 : index
    %54 = vector.load %arg4[%c0_18, %c0_19] : memref<4x1xf32, #tpu.memory_space<vmem>>, vector<4x1xf32>
    %55 = vector.shape_cast %54 : vector<4x1xf32> to vector<1x4x1xf32>
    %56 = vector.broadcast %55 : vector<1x4x1xf32> to vector<1x4x128xf32>
    %57 = arith.addf %53, %56 : vector<1x4x128xf32>
    %c0_20 = arith.constant 0 : index
    %c0_21 = arith.constant 0 : index
    %c0_22 = arith.constant 0 : index
    %58 = vector.load %arg5[%c0_20, %c0_21, %c0_22] : memref<1x4x128xf32, #tpu.memory_space<vmem>>, vector<1x4x128xf32>
    tpu.vector_store %arg5[%c0_20, %c0_21, %c0_22], %57 {strides = array<i32>} : memref<1x4x128xf32, #tpu.memory_space<vmem>>, vector<1x4x128xf32>,
    return
  }
  func.func @transform_0(%arg0: i32, %arg1: i32) -> (i32, i32, i32) {
    %c0_i32 = arith.constant 0 : i32
    %c0_i32_0 = arith.constant 0 : i32
    return %arg0, %c0_i32, %arg1 : i32, i32, i32
  }
  func.func @transform_1(%arg0: i32, %arg1: i32) -> (i32, i32) {
    %c0_i32 = arith.constant 0 : i32
    %c0_i32_0 = arith.constant 0 : i32
    %c0_i32_1 = arith.constant 0 : i32
    return %c0_i32, %c0_i32_0 : i32, i32
  }
  func.func @transform_2(%arg0: i32, %arg1: i32) -> (i32, i32) {
    %c0_i32 = arith.constant 0 : i32
    %c0_i32_0 = arith.constant 0 : i32
    %c0_i32_1 = arith.constant 0 : i32
    return %c0_i32, %c0_i32_0 : i32, i32
  }
  func.func @transform_3(%arg0: i32, %arg1: i32) -> (i32, i32, i32) {
    %c0_i32 = arith.constant 0 : i32
    %c0_i32_0 = arith.constant 0 : i32
    return %arg0, %c0_i32, %arg1 : i32, i32, i32
  }
}

</mosaic_0001>

<llo_original>
// kernel: tpu_custom_call.1
$region0: #{tpu_custom_call.1}
  #allocation0 [shape = 'u32[]', space=smem, size = 0x4, offset = 0x4, fixed_abs, tag = 'smem constant byte address 0x4 - core index']
  #allocation1 [shape = 'u32[72,128]{1,0:T(1,128)}', space=vmem, size = 0x9000, scoped, tag = 'internal scratch']
  #allocation2 [shape = 'f32[128,128]{1,0:T(8,128)}', space=vmem, size = 0x10000, scoped, tag = 'scratch operand']
  #allocation3 [shape = 'f32[2,1]{1,0:T(2,128)}', space=vmem, size = 0x400, scoped, tag = 'scratch operand']
  %s0 = inlined_call_operand.vmem [shape: f32[2,4,128], index: 0, kind: input, shape index: {}]
  %s1 = inlined_call_operand.vmem [shape: f32[4,1], index: 1, kind: input, shape index: {}]
  %s2 = inlined_call_operand.vmem [shape: f32[4,1], index: 2, kind: input, shape index: {}]
  %s3 = inlined_call_operand.hbm [shape: f32[2,4,128], index: 3, kind: output, shape index: {}]
  %s4 = sld [smem:[#allocation0]]
  $region49: #{tpu_custom_call.1} parent=0
    _
  %s6 = ssub.s32 1, %s4
  %s7 = scalar_select 0, %s6, %s4
  $region1: #{tpu_custom_call.1} parent=0
    #allocation4 [shape = 'u8[4096]{0}', space=vmem, size = 0x1000, scoped, tag = 'output window, operand 0']
    #allocation5 [shape = 's32[2]{0}', space=sflag, size = 0x8, scoped, tag = 'scoped memory for tpu_custom_call.1']
    %8 = vsyncpa [#allocation5], 0
    %s9 = scalar_lea.sflag [#allocation5], 1
    %10 = vsyncpa %s9, 0
    loop: start=0, step=1, limit=4
    $region2: #{tpu_custom_call.1} parent=1 // loop_pre_header
      _
    $region3: #{tpu_custom_call.1} parent=1 // loop_header
      %s12 = sphi 0, %s16
      %p13 = scmp.ge.s32.totalorder %s12, 4
      %s19 = sphi 0, %s31
      %s20 = sphi 0, %s27
      %s21 = sphi 0, %s19
      %s22 = sphi 0, %s20
      %s23 = sphi 0, %s21
      %s24 = sphi 0, %s22
      %s36 = sphi 0, %s38
      %s39 = sphi 0, %s36
      %s40 = sphi 0, %s39
      %s56 = sphi 0, %s40
      %s60 = sphi 0, %s60
      %s62 = sphi 0, %s60
      %s63 = sphi 0, %s62
      %s77 = sphi 0, %s63
      %s81 = sphi 0, %s81
      %s83 = sphi 0, %s81
      %s84 = sphi 0, %s83
      %s98 = sphi 0, %s84
      %s106 = sphi 0, %s108
      %s109 = sphi 0, %s106
      %s110 = sphi 0, %s109
      %s126 = sphi 0, %s110
    $region4: #{tpu_custom_call.1} parent=1 // loop_header_branch
      %15 = sbr.rel (%p13) target = $region8
    $region5: #{tpu_custom_call.1} parent=1 // loop_body
      %s17 = ssub.s32 %s12, 1
      %s18 = ssub.s32 %s12, 2
      %s25 = sadd.s32 1, %s20
      %p26 = scmp.ge.s32.totalorder %s25, 1
      %s27 = scalar_select %p26, 0, %s25
      %s28 = sadd.s32 1, %s19
      %s29 = scalar_select %p26, %s28, %s19
      %p30 = scmp.ge.s32.totalorder %s29, 2
      %s31 = scalar_select %p30, 0, %s29
      %s32 = ssub.s32 %s19, %s31
      %s33 = ssub.s32 %s20, %s27
      %s34 = sor.u32 %s32, %s33
      %p35 = scmp.eq.s32.totalorder %s34, 0
      %s37 = sadd.s32 %s36, 1
      %s38 = scalar_select %p35, %s36, %s37
      %p41 = pneg %p35
      %p42 = scmp.eq.s32.totalorder %s12, 1
      %p43 = por %p41, %p42
      %p44 = scmp.ne.s32.totalorder %s36, %s39
      %p45 = scmp.eq.s32.totalorder %s12, 0
      %p46 = por %p44, %p45
      %p47 = scmp.ne.s32.totalorder %s36, %s39
      %p48 = scmp.eq.s32.totalorder %s17, 1
      %p49 = por %p47, %p48
      %p50 = scmp.ne.s32.totalorder %s39, %s40
      %p51 = scmp.eq.s32.totalorder %s17, 0
      %p52 = por %p50, %p51
      %p53 = scmp.ne.s32.totalorder %s39, %s40
      %p54 = scmp.eq.s32.totalorder %s18, 1
      %p55 = por %p53, %p54
      %p57 = scmp.ne.s32.totalorder %s40, %s56
      %p58 = scmp.eq.s32.totalorder %s18, 0
      %p59 = por %p57, %p58
      %s61 = sadd.s32 %s60, 1
      %p64 = scmp.eq.s32.totalorder %s12, 1
      %p65 = scmp.ne.s32.totalorder %s60, %s62
      %p66 = scmp.eq.s32.totalorder %s12, 0
      %p67 = por %p65, %p66
      %p68 = scmp.ne.s32.totalorder %s60, %s62
      %p69 = scmp.eq.s32.totalorder %s17, 1
      %p70 = por %p68, %p69
      %p71 = scmp.ne.s32.totalorder %s62, %s63
      %p72 = scmp.eq.s32.totalorder %s17, 0
      %p73 = por %p71, %p72
      %p74 = scmp.ne.s32.totalorder %s62, %s63
      %p75 = scmp.eq.s32.totalorder %s18, 1
      %p76 = por %p74, %p75
      %p78 = scmp.ne.s32.totalorder %s63, %s77
      %p79 = scmp.eq.s32.totalorder %s18, 0
      %p80 = por %p78, %p79
      %s82 = sadd.s32 %s81, 1
      %p85 = scmp.eq.s32.totalorder %s12, 1
      %p86 = scmp.ne.s32.totalorder %s81, %s83
      %p87 = scmp.eq.s32.totalorder %s12, 0
      %p88 = por %p86, %p87
      %p89 = scmp.ne.s32.totalorder %s81, %s83
      %p90 = scmp.eq.s32.totalorder %s17, 1
      %p91 = por %p89, %p90
      %p92 = scmp.ne.s32.totalorder %s83, %s84
      %p93 = scmp.eq.s32.totalorder %s17, 0
      %p94 = por %p92, %p93
      %p95 = scmp.ne.s32.totalorder %s83, %s84
      %p96 = scmp.eq.s32.totalorder %s18, 1
      %p97 = por %p95, %p96
      %p99 = scmp.ne.s32.totalorder %s84, %s98
      %p100 = scmp.eq.s32.totalorder %s18, 0
      %p101 = por %p99, %p100
      %s102 = ssub.s32 %s19, %s31
      %s103 = ssub.s32 %s20, %s27
      %s104 = sor.u32 %s102, %s103
      %p105 = scmp.eq.s32.totalorder %s104, 0
      %s107 = sadd.s32 %s106, 1
      %s108 = scalar_select %p105, %s106, %s107
      %p111 = pneg %p105
      %p112 = scmp.eq.s32.totalorder %s12, 1
      %p113 = por %p111, %p112
      %p114 = scmp.ne.s32.totalorder %s106, %s109
      %p115 = scmp.eq.s32.totalorder %s12, 0
      %p116 = por %p114, %p115
      %p117 = scmp.ne.s32.totalorder %s106, %s109
      %p118 = scmp.eq.s32.totalorder %s17, 1
      %p119 = por %p117, %p118
      %p120 = scmp.ne.s32.totalorder %s109, %s110
      %p121 = scmp.eq.s32.totalorder %s17, 0
      %p122 = por %p120, %p121
      %p123 = scmp.ne.s32.totalorder %s109, %s110
      %p124 = scmp.eq.s32.totalorder %s18, 1
      %p125 = por %p123, %p124
      %p127 = scmp.ne.s32.totalorder %s110, %s126
      %p128 = scmp.eq.s32.totalorder %s18, 0
      %p129 = por %p127, %p128
      %p130 = scmp.le.s32.totalorder 1, %s12
      %p131 = scmp.lt.s32.totalorder %s12, 3
      %p132 = pnand %p130, %p131
      %p133 = pneg %p132
      // Predicated region
      $region9: #{tpu_custom_call.1} parent=5 // pred_check
        _
      $region10: #{tpu_custom_call.1} parent=5 // pred_check_branch
        %135 = sbr.rel (%p132) target = $region12
      $region11: #{tpu_custom_call.1} parent=5 // pred_region
        %s136 = ssub.s32 %s12, 1
        // Predicated region
        $region13: #{tpu_custom_call.1} parent=11 // pred_check
          %p137 = pneg %p73
        $region14: #{tpu_custom_call.1} parent=11 // pred_check_branch
          %139 = sbr.rel (%p137) target = $region16
        $region15: #{tpu_custom_call.1} parent=11 // pred_region
          _
        $region16: #{tpu_custom_call.1} parent=11 // pred_fallthru
          _
        // Predicated region
        $region17: #{tpu_custom_call.1} parent=11 // pred_check
          %p140 = pneg %p94
        $region18: #{tpu_custom_call.1} parent=11 // pred_check_branch
          %142 = sbr.rel (%p140) target = $region20
        $region19: #{tpu_custom_call.1} parent=11 // pred_region
          _
        $region20: #{tpu_custom_call.1} parent=11 // pred_fallthru
          _
      $region12: #{tpu_custom_call.1} parent=5 // pred_fallthru
        _
      %p143 = scmp.lt.s32.totalorder %s12, 2
      // Predicated region
      $region21: #{tpu_custom_call.1} parent=5 // pred_check
        %p144 = pneg %p143
      $region22: #{tpu_custom_call.1} parent=5 // pred_check_branch
        %146 = sbr.rel (%p144) target = $region24
      $region23: #{tpu_custom_call.1} parent=5 // pred_region
        // Predicated region
        $region25: #{tpu_custom_call.1} parent=23 // pred_check
          %p147 = pneg %p46
        $region26: #{tpu_custom_call.1} parent=23 // pred_check_branch
          %149 = sbr.rel (%p147) target = $region28
        $region27: #{tpu_custom_call.1} parent=23 // pred_region
          %p150 = scmp.lt.s32.totalorder %s19, 1
          %s151 = scalar_select %p150, %s19, 1
          %p152 = scmp.lt.s32.totalorder %s20, 0
          %s153 = scalar_select %p152, %s20, 0
          %s154 = sadd.s32 %s153, %s151
          %s155 = smul.addr %s154, 4
          %s156 = scalar_lea.vmem %s0, %s155
        $region28: #{tpu_custom_call.1} parent=23 // pred_fallthru
          _
      $region24: #{tpu_custom_call.1} parent=5 // pred_fallthru
        _
      %p157 = scmp.le.s32.totalorder 1, %s12
      %p158 = scmp.lt.s32.totalorder %s12, 3
      %p159 = pnand %p157, %p158
      %p160 = pneg %p159
      // Predicated region
      $region29: #{tpu_custom_call.1} parent=5 // pred_check
        _
      $region30: #{tpu_custom_call.1} parent=5 // pred_check_branch
        %162 = sbr.rel (%p159) target = $region32
      $region31: #{tpu_custom_call.1} parent=5 // pred_region
        %s163 = ssub.s32 %s12, 1
        %p164 = scmp.lt.s32.totalorder %s21, 1
        %s165 = scalar_select %p164, %s21, 1
        %p166 = scmp.lt.s32.totalorder %s22, 0
        %s167 = scalar_select %p166, %s22, 0
        %s168 = sadd.s32 %s167, %s165
        %s169 = smul.addr %s168, 4
        %s170 = scalar_lea.vmem %s0, %s169
        %p171 = pneg %p52
        %p172 = pneg %p49
        %p173 = pneg %p73
        %p174 = pneg %p70
        %p175 = pneg %p94
        %p176 = pneg %p91
        %p177 = pneg %p122
        %p178 = pneg %p119
        %s179 = sand.u32 %s109, 1
        %s180 = scalar_lea.sflag [#allocation5], %s179
        %s181 = sand.u32 %s109, 1
        %s182 = smul.addr %s181, 4
        %s183 = scalar_lea.vmem [#allocation4], %s182
        %p184 = scmp.lt.s32.totalorder %s21, 1
        %s185 = scalar_select %p184, %s21, 1
        %p186 = scmp.lt.s32.totalorder %s22, 0
        %s187 = scalar_select %p186, %s22, 0
        %s188 = sadd.s32 %s187, %s185
        %s189 = smul.addr %s188, 4
        %s190 = scalar_lea.vmem %s0, %s189
        %p191 = scmp.eq.s32.totalorder %s22, 0
        // Predicated region
        $region33: #{tpu_custom_call.1} parent=31 // pred_check
          %p192 = pneg %p191
        $region34: #{tpu_custom_call.1} parent=31 // pred_check_branch
          %194 = sbr.rel (%p192) target = $region36
        $region35: #{tpu_custom_call.1} parent=31 // pred_region
          %v195 = vlaneseq
          %v196 = vshrl.u32 %v195, 7
          %v197 = vadd.s32 %v196, 8
          %v198 = vadd.s32 %v196, 16
          %v199 = vadd.s32 %v196, 24
          %v200 = vadd.s32 %v196, 32
          %v201 = vadd.s32 %v196, 40
          %v202 = vadd.s32 %v196, 48
          %v203 = vadd.s32 %v196, 56
          %v204 = vadd.s32 %v196, 64
          %v205 = vadd.s32 %v196, 72
          %v206 = vadd.s32 %v196, 80
          %v207 = vadd.s32 %v196, 88
          %v208 = vadd.s32 %v196, 96
          %v209 = vadd.s32 %v196, 104
          %v210 = vadd.s32 %v196, 112
          %v211 = vadd.s32 %v196, 120
          %v212 = vlaneseq
          %v213 = vand.u32 %v212, 127
          %vm214 = vcmp.le.s32.totalorder %v196, %v213
          %vm215 = vcmp.le.s32.totalorder %v197, %v213
          %vm216 = vcmp.le.s32.totalorder %v198, %v213
          %vm217 = vcmp.le.s32.totalorder %v199, %v213
          %vm218 = vcmp.le.s32.totalorder %v200, %v213
          %vm219 = vcmp.le.s32.totalorder %v201, %v213
          %vm220 = vcmp.le.s32.totalorder %v202, %v213
          %vm221 = vcmp.le.s32.totalorder %v203, %v213
          %vm222 = vcmp.le.s32.totalorder %v204, %v213
          %vm223 = vcmp.le.s32.totalorder %v205, %v213
          %vm224 = vcmp.le.s32.totalorder %v206, %v213
          %vm225 = vcmp.le.s32.totalorder %v207, %v213
          %vm226 = vcmp.le.s32.totalorder %v208, %v213
          %vm227 = vcmp.le.s32.totalorder %v209, %v213
          %vm228 = vcmp.le.s32.totalorder %v210, %v213
          %vm229 = vcmp.le.s32.totalorder %v211, %v213
          %v230 = vsel %vm214, 1.0, 0.0
          %v231 = vsel %vm215, 1.0, 0.0
          %v232 = vsel %vm216, 1.0, 0.0
          %v233 = vsel %vm217, 1.0, 0.0
          %v234 = vsel %vm218, 1.0, 0.0
          %v235 = vsel %vm219, 1.0, 0.0
          %v236 = vsel %vm220, 1.0, 0.0
          %v237 = vsel %vm221, 1.0, 0.0
          %v238 = vsel %vm222, 1.0, 0.0
          %v239 = vsel %vm223, 1.0, 0.0
          %v240 = vsel %vm224, 1.0, 0.0
          %v241 = vsel %vm225, 1.0, 0.0
          %v242 = vsel %vm226, 1.0, 0.0
          %v243 = vsel %vm227, 1.0, 0.0
          %v244 = vsel %vm228, 1.0, 0.0
          %v245 = vsel %vm229, 1.0, 0.0
          %246 = vst [vmem:[#allocation2] sm:$0xff] %v230
          %247 = vst [vmem:[#allocation2 + $0x8] sm:$0xff] %v231
          %248 = vst [vmem:[#allocation2 + $0x10] sm:$0xff] %v232
          %249 = vst [vmem:[#allocation2 + $0x18] sm:$0xff] %v233
          %250 = vst [vmem:[#allocation2 + $0x20] sm:$0xff] %v234
          %251 = vst [vmem:[#allocation2 + $0x28] sm:$0xff] %v235
          %252 = vst [vmem:[#allocation2 + $0x30] sm:$0xff] %v236
          %253 = vst [vmem:[#allocation2 + $0x38] sm:$0xff] %v237
          %254 = vst [vmem:[#allocation2 + $0x40] sm:$0xff] %v238
          %255 = vst [vmem:[#allocation2 + $0x48] sm:$0xff] %v239
          %256 = vst [vmem:[#allocation2 + $0x50] sm:$0xff] %v240
          %257 = vst [vmem:[#allocation2 + $0x58] sm:$0xff] %v241
          %258 = vst [vmem:[#allocation2 + $0x60] sm:$0xff] %v242
          %259 = vst [vmem:[#allocation2 + $0x68] sm:$0xff] %v243
          %260 = vst [vmem:[#allocation2 + $0x70] sm:$0xff] %v244
          %261 = vst [vmem:[#allocation2 + $0x78] sm:$0xff] %v245
          %vm262 = vcmask 1024
          %263 = vst.msk [vmem:[#allocation3] sm:$0x3] %vm262, 0.0
        $region36: #{tpu_custom_call.1} parent=31 // pred_fallthru
          _
        %v264 = vld [vmem:[%s190] sm:$0xf]
        %vm265 = vcmask 1043456
        %v266 = vsel %vm265, %v264, 0.0
        %v267 = vrot.slane %v266, 4
        %v268 = vadd.f32 %v266, %v267
        %v269 = vrot.slane %v268, 2
        %v270 = vadd.f32 %v268, %v269
        %v271 = vrot.slane %v270, 1
        %v272 = vadd.f32 %v270, %v271
        %v273 = vmul.f32 %v264, %v264
        %v274 = vsel %vm265, %v273, 0.0
        %v275 = vrot.slane %v274, 4
        %v276 = vadd.f32 %v274, %v275
        %v277 = vrot.slane %v276, 2
        %v278 = vadd.f32 %v276, %v277
        %v279 = vrot.slane %v278, 1
        %v280 = vadd.f32 %v278, %v279
        %vm281 = vcmask 1040384
        %v282 = vsel %vm281, %v272, %v280
        %v283 = vld [vmem:[#allocation2] sm:$0xff]
        %v284 = vld [vmem:[#allocation2 + $0x8] sm:$0xff]
        %v285 = vld [vmem:[#allocation2 + $0x10] sm:$0xff]
        %v286 = vld [vmem:[#allocation2 + $0x18] sm:$0xff]
        %v287 = vld [vmem:[#allocation2 + $0x20] sm:$0xff]
        %v288 = vld [vmem:[#allocation2 + $0x28] sm:$0xff]
        %v289 = vld [vmem:[#allocation2 + $0x30] sm:$0xff]
        %v290 = vld [vmem:[#allocation2 + $0x38] sm:$0xff]
        %v291 = vld [vmem:[#allocation2 + $0x40] sm:$0xff]
        %v292 = vld [vmem:[#allocation2 + $0x48] sm:$0xff]
        %v293 = vld [vmem:[#allocation2 + $0x50] sm:$0xff]
        %v294 = vld [vmem:[#allocation2 + $0x58] sm:$0xff]
        %v295 = vld [vmem:[#allocation2 + $0x60] sm:$0xff]
        %v296 = vld [vmem:[#allocation2 + $0x68] sm:$0xff]
        %v297 = vld [vmem:[#allocation2 + $0x70] sm:$0xff]
        %v298 = vld [vmem:[#allocation2 + $0x78] sm:$0xff]
        %v299 = vld [vmem:[#allocation3] sm:$0x3]
        %301 = vset.pattern.permute.xlu0 0
        %302 = vperm.xlu0 %301, %v299
        %v303 = vpop.permute.xlu0 %302
        %305 = vmatpush.msra.mxu0 %v298
        %306 = vmatpush.msra.mxu0 %v297
        %307 = vmatpush.msra.mxu0 %v296
        %308 = vmatpush.msra.mxu0 %v295
        %309 = vmatpush.msra.mxu0 %v294
        %310 = vmatpush.msra.mxu0 %v293
        %311 = vmatpush.msra.mxu0 %v292
        %312 = vmatpush.msra.mxu0 %v291
        %313 = vmatpush.msra.mxu0 %v290
        %314 = vmatpush.msra.mxu0 %v289
        %315 = vmatpush.msra.mxu0 %v288
        %316 = vmatpush.msra.mxu0 %v287
        %317 = vmatpush.msra.mxu0 %v286
        %318 = vmatpush.msra.mxu0 %v285
        %319 = vmatpush.msra.mxu0 %v284
        %320 = vmatpush.msra.mxu0 %v283
        %321 = vmatmul.f32.gmra.mxu0 %v282
        %v322 = vpop.f32.mrf.mxu0
        %v323 = vadd.f32 %v303, %v322
        %324 = vdwg.mxu0
        %326 = vrot.lane.b32.xlu0 %v323, 1
        %v327 = vpop.permute.xlu0 %326
        %vm329 = vcmask 1024
        %330 = vst.msk [vmem:[#allocation3] sm:$0x3] %vm329, %v327
        %v331 = vlaneseq
        %v332 = vand.u32 %v331, 127
        %v333 = vcvt.s32.f32 %v332
        %s334 = smul.u32 %s22, 128
        %s335 = sadd.s32 %s334, 1
        %s336 = scvt.s32.f32 %s335
        %v337 = vstv %s336
        %v338 = vadd.f32 %v333, %v337
        %v339 = vmul.f32 %v338, 4.0
        %v340 = vrcp.pop %v339
        %v341 = vmul.f32 %v339, %v340
        %v342 = vsub.f32 2.0, %v341
        %v343 = vmul.f32 %v340, %v342
        %v344 = vmul.f32 %v323, %v343
        %v345 = vmul.f32 %v344, 2.0
        %v346 = vmul.f32 %v345, %v323
        %v348 = vrot.slane %v346, 7
        %v350 = vsub.f32 %v323, %v348
        %v351 = vmul.f32 %v350, %v343
        %v352 = vmul.f32 %v344, %v344
        %v354 = vrot.slane %v352, 7
        %v356 = vadd.f32 %v351, %v354
        %v357 = vmax.f32 %v356, 0.0
        %v358 = vadd.f32 %v357, 1e-08
        %v359 = vrsqrt.pop %v358
        %v360 = vmul.f32 %v359, %v358
        %v361 = vmul.f32 %v360, %v359
        %v362 = vmul.f32 0.5, %v361
        %v363 = vsub.f32 1.5, %v362
        %v364 = vmul.f32 %v359, %v363
        %vm365 = vweird.f32 %v358
        %vm366 = vweird.f32 %v359
        %vm367 = vmor %vm365, %vm366
        %v368 = vsel %vm367, %v359, %v364
        %v369 = vperm.slane %v344, 0
        %v370 = vsub.f32 %v264, %v369
        %v371 = vperm.slane %v368, 1
        %v372 = vmul.f32 %v370, %v371
        %v373 = vld [vmem:[%s1] sm:$0xf]
        %375 = vset.pattern.permute.xlu0 0
        %376 = vperm.xlu0 %375, %v373
        %v377 = vpop.permute.xlu0 %376
        %v379 = vmul.f32 %v372, %v377
        %v380 = vld [vmem:[%s2] sm:$0xf]
        %382 = vset.pattern.permute.xlu0 0
        %383 = vperm.xlu0 %382, %v380
        %v384 = vpop.permute.xlu0 %383
        %v386 = vadd.f32 %v379, %v384
        %387 = vst [vmem:[%s183] sm:$0xf] %v386
        %s388 = sand.u32 %s109, 1
        %s389 = scalar_lea.sflag [#allocation5], %s388
        %s390 = sand.u32 %s109, 1
        %s391 = smul.addr %s390, 4
        %s392 = scalar_lea.vmem [#allocation4], %s391
        // Predicated region
        $region37: #{tpu_custom_call.1} parent=31 // pred_check
          %p393 = pneg %p119
        $region38: #{tpu_custom_call.1} parent=31 // pred_check_branch
          %395 = sbr.rel (%p393) target = $region40
        $region39: #{tpu_custom_call.1} parent=31 // pred_region
          %397 = vsyncadd %s389, 0
          %s398 = sadd.s32 %s22, %s21
          %s399 = smul.addr %s398, 4
          %s400 = scalar_lea.hbm %s3, %s399
          %s402 = sshll.u32 %s392, 4
          %s403 = int_to_ptr.vmem [resolvable:$true] %s402
          %s404 = sshll.u32 %s400, 4
          %s405 = int_to_ptr.hbm [resolvable:$true] %s404
          %407 = dma.vmem_to_hbm [thread:$0]  %s403, 64, %s405, %s389
        $region40: #{tpu_custom_call.1} parent=31 // pred_fallthru
          _
      $region32: #{tpu_custom_call.1} parent=5 // pred_fallthru
        _
      %p408 = scmp.le.s32.totalorder 2, %s12
      // Predicated region
      $region41: #{tpu_custom_call.1} parent=5 // pred_check
        %p409 = pneg %p408
      $region42: #{tpu_custom_call.1} parent=5 // pred_check_branch
        %411 = sbr.rel (%p409) target = $region44
      $region43: #{tpu_custom_call.1} parent=5 // pred_region
        %s412 = ssub.s32 %s12, 2
        // Predicated region
        $region45: #{tpu_custom_call.1} parent=43 // pred_check
          %p413 = pneg %p125
        $region46: #{tpu_custom_call.1} parent=43 // pred_check_branch
          %415 = sbr.rel (%p413) target = $region48
        $region47: #{tpu_custom_call.1} parent=43 // pred_region
          %s416 = sand.u32 %s110, 1
          %s417 = scalar_lea.sflag [#allocation5], %s416
          %s418 = sand.u32 %s110, 1
          %s419 = smul.addr %s418, 4
          %s420 = scalar_lea.vmem [#allocation4], %s419
          %422 = dma.done %s417, 64
        $region48: #{tpu_custom_call.1} parent=43 // pred_fallthru
          _
      $region44: #{tpu_custom_call.1} parent=5 // pred_fallthru
        _
    $region6: #{tpu_custom_call.1} parent=1 // loop_footer
      %s16 = sadd.s32 1, %s12
    $region7: #{tpu_custom_call.1} parent=1 // loop_footer_branch
      %11 = sbr.rel target = $region3
    $region8: #{tpu_custom_call.1} parent=1 // loop_exit
      _
    %423 = vsyncpa [#allocation5], 1
    %s424 = scalar_lea.sflag [#allocation5], 1
    %425 = vsyncpa %s424, 1

</llo_original>
